<compile_context>
chip_gen: v6e
topology: v6e:2x2x1
jax: 0.10.0
libtpu: 0.0.40
codegen_flags: <defaults>
</compile_context>

<pallas_src>
import functools

import jax
import jax.numpy as jnp
import numpy as np
from jax.experimental import pallas as pl
from jax.experimental.pallas import tpu as pltpu


# ----------------------------- Pallas kernel -------------------------------
def gnn_critic_kernel(
    slab_ref,    # (R, 128) packed constants: A_hat, Wg, W1, W2, w3 row, biases, group indicator
    xin_ref,     # (N, C+2) per-call data: [state | action | price] columns
    out_ref,     # (1, B)   lane-dense output
    *, C, H, B, N,
    off_ahat, off_wg, off_w1, off_w2, off_misc, off_group,
):
    f32 = jnp.float32

    x_in = xin_ref[...]                               # (N, C+2)
    state = x_in[:, :C]                               # same lane tile -> free slice

    # Static slices into the constants slab (no extra DMA operands).
    a_hat = slab_ref[off_ahat:off_ahat + N, :N]       # (N, N)
    wg    = slab_ref[off_wg:off_wg + C, :C]           # (C, C)
    w1    = slab_ref[off_w1:off_w1 + C + 2, :H]       # (C+2, H) full lin1 weight
    w2    = slab_ref[off_w2:off_w2 + H, :H]           # (H, H)
    w3    = slab_ref[off_misc:off_misc + 1, :H]       # (1, H)  lin3 weight as a row
    bg    = slab_ref[off_misc + 1:off_misc + 2, :C]   # (1, C)
    b1    = slab_ref[off_misc + 2:off_misc + 3, :H]   # (1, H)
    b2    = slab_ref[off_misc + 3:off_misc + 4, :H]   # (1, H)
    b3    = slab_ref[off_misc + 4:off_misc + 5, 0:1]  # (1, 1)
    group = slab_ref[off_group:off_group + B, :N]     # (B, N) precomputed readout indicator

    # GCNConv: relu(A_hat @ (X @ Wg) + bg)
    xw = jnp.dot(state, wg, preferred_element_type=f32)
    h = jnp.maximum(jnp.dot(a_hat, xw, preferred_element_type=f32) + bg, 0.0)

    # lin1 on concat([h + state, action, price], -1):
    #   concat @ W1 == x_in @ W1 + h @ W1[:C]   (no in-kernel lane concat needed)
    y1 = (jnp.dot(x_in, w1, preferred_element_type=f32)
          + jnp.dot(h, w1[:C, :], preferred_element_type=f32)
          + b1)
    y1 = jnp.maximum(y1, 0.0)                         # (N, H)

    # lin2
    y2 = jnp.maximum(jnp.dot(y1, w2, preferred_element_type=f32) + b2, 0.0)  # (N, H)

    # node-sum readout per batch element
    s = jnp.dot(group, y2, preferred_element_type=f32)                        # (B, H)

    # lin3: contract the last dims of (1,H) and (B,H) -> lane-dense (1, B)
    out = jax.lax.dot_general(w3, s, (((1,), (1,)), ((), ())),
                              preferred_element_type=f32) + b3
    out_ref[...] = out


# -------------------- hoisted, per-graph host-side setup --------------------
def build_gcn_adjacency_np(edge_index, num_nodes):
    """Dense normalized adjacency matching PyG GCNConv (add_self_loops, sym norm).

    Built with numpy ONCE per graph topology; no per-call TPU scatter-add.
    """
    edge_index = np.asarray(edge_index)
    src = edge_index[0]
    dst = edge_index[1]
    loop = np.arange(num_nodes, dtype=src.dtype)
    src = np.concatenate([src, loop])
    dst = np.concatenate([dst, loop])
    deg = np.zeros((num_nodes,), np.float32)
    np.add.at(deg, dst, 1.0)
    dinv = np.where(deg > 0, 1.0 / np.sqrt(deg), 0.0).astype(np.float32)
    norm = dinv[src] * dinv[dst]
    a_hat = np.zeros((num_nodes, num_nodes), np.float32)
    np.add.at(a_hat, (dst, src), norm)
    return a_hat


def _r8(x):
    return ((x + 7) // 8) * 8


def pack_constants(params, a_hat, *, act_dim, batch):
    """One-time packing of every per-graph constant into a single (R, 128) f32 slab.

    Section starts are sublane(8)-aligned so in-kernel slices stay tile-friendly.
    Layout: [A_hat | Wg | W1 | W2 | (w3 row, bg, b1, b2, b3) | group indicator].
    """
    C = params["wg"].shape[0]
    H = params["w2"].shape[0]
    N = batch * act_dim
    W = max(128, ((max(N, H, C + 2) + 127) // 128) * 128)

    off_ahat = 0
    off_wg = off_ahat + _r8(N)
    off_w1 = off_wg + _r8(C)
    off_w2 = off_w1 + _r8(C + 2)
    off_misc = off_w2 + _r8(H)
    off_group = off_misc + 8
    rows = off_group + _r8(batch)

    slab = np.zeros((rows, W), np.float32)
    slab[off_ahat:off_ahat + N, :N] = np.asarray(a_hat, np.float32)
    slab[off_wg:off_wg + C, :C] = np.asarray(params["wg"], np.float32)
    slab[off_w1:off_w1 + C + 2, :H] = np.asarray(params["w1"], np.float32)
    slab[off_w2:off_w2 + H, :H] = np.asarray(params["w2"], np.float32)
    slab[off_misc, :H] = np.asarray(params["w3"], np.float32)[:, 0]      # lin3 weight as row
    slab[off_misc + 1, :C] = np.asarray(params["bg"], np.float32)[0]
    slab[off_misc + 2, :H] = np.asarray(params["b1"], np.float32)[0]
    slab[off_misc + 3, :H] = np.asarray(params["b2"], np.float32)[0]
    slab[off_misc + 4, 0] = float(np.asarray(params["b3"])[0, 0])
    for b in range(batch):                                               # readout indicator
        slab[off_group + b, b * act_dim:(b + 1) * act_dim] = 1.0

    meta = dict(C=C, H=H, N=N, B=batch, act_dim=act_dim,
                off_ahat=off_ahat, off_wg=off_wg, off_w1=off_w1,
                off_w2=off_w2, off_misc=off_misc, off_group=off_group)
    return jnp.asarray(slab), meta


# ------------------------------ JAX wrapper ---------------------------------
def gnn_critic_forward(slab, state, action, price, *, meta):
    C, H, N, B = meta["C"], meta["H"], meta["N"], meta["B"]
    act_dim = meta["act_dim"]

    # Single per-call operand: [state | action | price] columns, one XLA concat.
    act_col = action.reshape(N, 1).astype(jnp.float32)
    price_col = jnp.repeat(price.astype(jnp.float32), act_dim, axis=1).reshape(N, 1)
    x_in = jnp.concatenate([state.astype(jnp.float32), act_col, price_col], axis=-1)

    kernel = functools.partial(
        gnn_critic_kernel, C=C, H=H, B=B, N=N,
        off_ahat=meta["off_ahat"], off_wg=meta["off_wg"], off_w1=meta["off_w1"],
        off_w2=meta["off_w2"], off_misc=meta["off_misc"], off_group=meta["off_group"])

    vmem = pl.BlockSpec(memory_space=pltpu.MemorySpace.VMEM)
    flops = 2 * N * (C * C + N * C + (C + 2) * H + C * H + H * H) + 2 * B * (N * H + H)
    bytes_accessed = 4 * (int(slab.size) + N * (C + 2) + B)

    # Gridless single-TC call: 2 operands, everything resident in VMEM.
    out = pl.pallas_call(
        kernel,
        out_shape=jax.ShapeDtypeStruct((1, B), jnp.float32),
        in_specs=[vmem, vmem],
        out_specs=vmem,
        cost_estimate=pl.CostEstimate(flops=flops, transcendentals=0,
                                      bytes_accessed=bytes_accessed),
    )(slab, x_in)
    return out[0]                                                        # (B,)


# Pure-JAX reference (same math, no Pallas) for a sanity check.
def gnn_critic_reference(params, state, a_hat, action, price, *, act_dim):
    N, C = state.shape
    B = N // act_dim
    h = jnp.maximum(a_hat @ (state @ params["wg"]) + params["bg"], 0.0)
    x = (h + state).reshape(B, act_dim, C)
    price_rep = jnp.repeat(price, act_dim, axis=1)[..., None]
    concat = jnp.concatenate([x, action[..., None], price_rep], axis=-1)
    y1 = jnp.maximum(concat @ params["w1"] + params["b1"], 0.0)
    y2 = jnp.maximum(y1 @ params["w2"] + params["b2"], 0.0)
    s = jnp.sum(y2, axis=1)
    return (s @ params["w3"] + params["b3"])[:, 0]


def init_params(key, in_channels, hidden_size):
    ks = jax.random.split(key, 8)
    C, H = in_channels, hidden_size
    scale = 0.1
    return {
        "wg": scale * jax.random.normal(ks[0], (C, C), jnp.float32),
        "bg": scale * jax.random.normal(ks[1], (1, C), jnp.float32),
        "w1": scale * jax.random.normal(ks[2], (C + 2, H), jnp.float32),
        "b1": scale * jax.random.normal(ks[3], (1, H), jnp.float32),
        "w2": scale * jax.random.normal(ks[4], (H, H), jnp.float32),
        "b2": scale * jax.random.normal(ks[5], (1, H), jnp.float32),
        "w3": scale * jax.random.normal(ks[6], (H, 1), jnp.float32),
        "b3": scale * jax.random.normal(ks[7], (1, 1), jnp.float32),
    }


if __name__ == "__main__":
    IN_CHANNELS = 4
    HIDDEN = 32
    ACT_DIM = 6
    BATCH = 2
    N = BATCH * ACT_DIM

    key = jax.random.PRNGKey(0)
    k_state, k_act, k_price, k_param = jax.random.split(key, 4)

    state = jax.random.normal(k_state, (N, IN_CHANNELS), jnp.float32)
    action = jax.random.uniform(k_act, (BATCH, ACT_DIM), jnp.float32)
    price = jax.random.uniform(k_price, (BATCH, 1), jnp.float32)

    # ring graph (both directions) within each batched sub-graph of ACT_DIM nodes
    src_list, dst_list = [], []
    for b in range(BATCH):
        off = b * ACT_DIM
        for i in range(ACT_DIM):
            j = (i + 1) % ACT_DIM
            src_list += [off + i, off + j]
            dst_list += [off + j, off + i]
    edge_index = np.array([src_list, dst_list], dtype=np.int32)          # (2, 24)

    # Hoisted constants: adjacency + all weights/biases + readout indicator packed once.
    a_hat_np = build_gcn_adjacency_np(edge_index, N)
    params = init_params(k_param, IN_CHANNELS, HIDDEN)
    slab, meta = pack_constants(params, a_hat_np, act_dim=ACT_DIM, batch=BATCH)

    fwd = jax.jit(functools.partial(gnn_critic_forward, meta=meta))
    out = jax.block_until_ready(fwd(slab, state, action, price))

    ref = gnn_critic_reference(params, state, jnp.asarray(a_hat_np), action, price,
                               act_dim=ACT_DIM)
    np.testing.assert_allclose(np.asarray(out), np.asarray(ref),
                               rtol=1e-5, atol=1e-5)
    print("KERNEL_OK")
</pallas_src>

<mosaic_0001>
module attributes {stable_mosaic.version = 11 : i64} {
  func.func @gnn_critic_kernel(%arg0: memref<80x128xf32, #tpu.memory_space<vmem>>, %arg1: memref<12x6xf32, #tpu.memory_space<vmem>>, %arg2: memref<1x2xf32, #tpu.memory_space<vmem>>) attributes {dimension_semantics = [], scalar_prefetch = 0 : i64, scratch_operands = 0 : i64, tpu.core_type = #tpu.core_type<tc>} {
    %c0 = arith.constant 0 : index
    %c0_0 = arith.constant 0 : index
    %0 = vector.load %arg1[%c0, %c0_0] : memref<12x6xf32, #tpu.memory_space<vmem>>, vector<12x6xf32>
    %1 = vector.extract_strided_slice %0 {offsets = [0, 0], sizes = [12, 4], strides = [1, 1]} : vector<12x6xf32> to vector<12x4xf32>
    %c0_1 = arith.constant 0 : index
    %c0_2 = arith.constant 0 : index
    %2 = vector.load %arg0[%c0_1, %c0_2] : memref<80x128xf32, #tpu.memory_space<vmem>>, vector<12x12xf32>
    %c16 = arith.constant 16 : index
    %c0_3 = arith.constant 0 : index
    %3 = vector.load %arg0[%c16, %c0_3] : memref<80x128xf32, #tpu.memory_space<vmem>>, vector<4x4xf32>
    %c24 = arith.constant 24 : index
    %c0_4 = arith.constant 0 : index
    %4 = vector.load %arg0[%c24, %c0_4] : memref<80x128xf32, #tpu.memory_space<vmem>>, vector<6x32xf32>
    %c32 = arith.constant 32 : index
    %c0_5 = arith.constant 0 : index
    %5 = vector.load %arg0[%c32, %c0_5] : memref<80x128xf32, #tpu.memory_space<vmem>>, vector<32x32xf32>
    %c64 = arith.constant 64 : index
    %c0_6 = arith.constant 0 : index
    %6 = vector.load %arg0[%c64, %c0_6] : memref<80x128xf32, #tpu.memory_space<vmem>>, vector<1x32xf32>
    %c65 = arith.constant 65 : index
    %c0_7 = arith.constant 0 : index
    %7 = vector.load %arg0[%c65, %c0_7] : memref<80x128xf32, #tpu.memory_space<vmem>>, vector<1x4xf32>
    %c66 = arith.constant 66 : index
    %c0_8 = arith.constant 0 : index
    %8 = vector.load %arg0[%c66, %c0_8] : memref<80x128xf32, #tpu.memory_space<vmem>>, vector<1x32xf32>
    %c67 = arith.constant 67 : index
    %c0_9 = arith.constant 0 : index
    %9 = vector.load %arg0[%c67, %c0_9] : memref<80x128xf32, #tpu.memory_space<vmem>>, vector<1x32xf32>
    %c68 = arith.constant 68 : index
    %c0_10 = arith.constant 0 : index
    %10 = vector.load %arg0[%c68, %c0_10] : memref<80x128xf32, #tpu.memory_space<vmem>>, vector<1x1xf32>
    %c72 = arith.constant 72 : index
    %c0_11 = arith.constant 0 : index
    %11 = vector.load %arg0[%c72, %c0_11] : memref<80x128xf32, #tpu.memory_space<vmem>>, vector<2x12xf32>
    %cst = arith.constant dense<0.000000e+00> : vector<12x4xf32>
    %12 = tpu.matmul %1, %3, %cst {dimension_numbers = #tpu.dot_dimension_numbers<[1], [0], [0], [1], [0, 0, 1, 1], [], []>} : vector<12x4xf32>, vector<4x4xf32>, vector<12x4xf32> -> vector<12x4xf32>
    %cst_12 = arith.constant dense<0.000000e+00> : vector<12x4xf32>
    %13 = tpu.matmul %2, %12, %cst_12 {dimension_numbers = #tpu.dot_dimension_numbers<[1], [0], [0], [1], [0, 0, 1, 1], [], []>} : vector<12x12xf32>, vector<12x4xf32>, vector<12x4xf32> -> vector<12x4xf32>
    %14 = vector.broadcast %7 : vector<1x4xf32> to vector<12x4xf32>
    %15 = arith.addf %13, %14 : vector<12x4xf32>
    %cst_13 = arith.constant 0.000000e+00 : f32
    %16 = vector.broadcast %cst_13 : f32 to vector<12x4xf32>
    %17 = arith.maximumf %15, %16 : vector<12x4xf32>
    %cst_14 = arith.constant dense<0.000000e+00> : vector<12x32xf32>
    %18 = tpu.matmul %0, %4, %cst_14 {dimension_numbers = #tpu.dot_dimension_numbers<[1], [0], [0], [1], [0, 0, 1, 1], [], []>} : vector<12x6xf32>, vector<6x32xf32>, vector<12x32xf32> -> vector<12x32xf32>
    %19 = vector.extract_strided_slice %4 {offsets = [0, 0], sizes = [4, 32], strides = [1, 1]} : vector<6x32xf32> to vector<4x32xf32>
    %cst_15 = arith.constant dense<0.000000e+00> : vector<12x32xf32>
    %20 = tpu.matmul %17, %19, %cst_15 {dimension_numbers = #tpu.dot_dimension_numbers<[1], [0], [0], [1], [0, 0, 1, 1], [], []>} : vector<12x4xf32>, vector<4x32xf32>, vector<12x32xf32> -> vector<12x32xf32>
    %21 = arith.addf %18, %20 : vector<12x32xf32>
    %22 = vector.broadcast %8 : vector<1x32xf32> to vector<12x32xf32>
    %23 = arith.addf %21, %22 : vector<12x32xf32>
    %cst_16 = arith.constant 0.000000e+00 : f32
    %24 = vector.broadcast %cst_16 : f32 to vector<12x32xf32>
    %25 = arith.maximumf %23, %24 : vector<12x32xf32>
    %cst_17 = arith.constant dense<0.000000e+00> : vector<12x32xf32>
    %26 = tpu.matmul %25, %5, %cst_17 {dimension_numbers = #tpu.dot_dimension_numbers<[1], [0], [0], [1], [0, 0, 1, 1], [], []>} : vector<12x32xf32>, vector<32x32xf32>, vector<12x32xf32> -> vector<12x32xf32>
    %27 = vector.broadcast %9 : vector<1x32xf32> to vector<12x32xf32>
    %28 = arith.addf %26, %27 : vector<12x32xf32>
    %cst_18 = arith.constant 0.000000e+00 : f32
    %29 = vector.broadcast %cst_18 : f32 to vector<12x32xf32>
    %30 = arith.maximumf %28, %29 : vector<12x32xf32>
    %cst_19 = arith.constant dense<0.000000e+00> : vector<2x32xf32>
    %31 = tpu.matmul %11, %30, %cst_19 {dimension_numbers = #tpu.dot_dimension_numbers<[1], [0], [0], [1], [0, 0, 1, 1], [], []>} : vector<2x12xf32>, vector<12x32xf32>, vector<2x32xf32> -> vector<2x32xf32>
    %cst_20 = arith.constant dense<0.000000e+00> : vector<1x2xf32>
    %32 = tpu.matmul %6, %31, %cst_20 {dimension_numbers = #tpu.dot_dimension_numbers<[1], [1], [0], [0], [0, 0, 1, 0], [], []>} : vector<1x32xf32>, vector<2x32xf32>, vector<1x2xf32> -> vector<1x2xf32>
    %33 = vector.broadcast %10 : vector<1x1xf32> to vector<1x2xf32>
    %34 = arith.addf %32, %33 : vector<1x2xf32>
    %c0_21 = arith.constant 0 : index
    %c0_22 = arith.constant 0 : index
    %35 = vector.load %arg2[%c0_21, %c0_22] : memref<1x2xf32, #tpu.memory_space<vmem>>, vector<1x2xf32>
    tpu.vector_store %arg2[%c0_21, %c0_22], %34 {strides = array<i32>} : memref<1x2xf32, #tpu.memory_space<vmem>>, vector<1x2xf32>,
    return
  }
}

</mosaic_0001>

<llo_original>
// kernel: gnn_critic_forward.1
$region0: #{gnn_critic_forward.1}
  #allocation0 [shape = 'u32[]', space=smem, size = 0x4, offset = 0x4, fixed_abs, tag = 'smem constant byte address 0x4 - core index']
  #allocation1 [shape = 'u32[144,128]{1,0:T(1,128)}', space=vmem, size = 0x12000, scoped, tag = 'internal scratch']
  %s0 = inlined_call_operand.vmem [shape: f32[80,128], index: 0, kind: input, shape index: {}]
  %s1 = inlined_call_operand.vmem [shape: f32[12,6], index: 1, kind: input, shape index: {}]
  %s2 = inlined_call_operand.hbm [shape: f32[1,2], index: 2, kind: output, shape index: {}]
  %s3 = sld [smem:[#allocation0]]
  $region18: #{gnn_critic_forward.1} parent=0
    _
  %s5 = ssub.s32 1, %s3
  %s6 = scalar_select 0, %s5, %s3
  $region1: #{gnn_critic_forward.1} parent=0
    #allocation2 [shape = 'u8[512]{0}', space=vmem, size = 0x400, scoped, tag = 'output window, operand 0, single buffered']
    #allocation3 [shape = 's32[1]{0}', space=sflag, size = 0x4, scoped, tag = 'scoped memory for gnn_critic_forward.1']
    %7 = vsyncpa [#allocation3], 0
    // Predicated region
    $region2: #{gnn_critic_forward.1} parent=1 // pred_check
      _
    $region3: #{gnn_critic_forward.1} parent=1 // pred_check_branch
      %9 = sbr.rel (0) target = $region5
    $region4: #{gnn_critic_forward.1} parent=1 // pred_region
      _
    $region5: #{gnn_critic_forward.1} parent=1 // pred_fallthru
      _
    // Predicated region
    $region6: #{gnn_critic_forward.1} parent=1 // pred_check
      _
    $region7: #{gnn_critic_forward.1} parent=1 // pred_check_branch
      %11 = sbr.rel (0) target = $region9
    $region8: #{gnn_critic_forward.1} parent=1 // pred_region
      _
    $region9: #{gnn_critic_forward.1} parent=1 // pred_fallthru
      _
    %v12 = vld [vmem:[%s1] sm:$0xff]
    %v13 = vld [vmem:[%s1 + $0x8] sm:$0xf]
    %v14 = vld [vmem:[%s0] sm:$0xff]
    %v15 = vld [vmem:[%s0 + $0x8] sm:$0xf]
    %v16 = vld [vmem:[%s0 + $0x10] sm:$0xf]
    %v17 = vld [vmem:[%s0 + $0x18] sm:$0x3f]
    %v18 = vld [vmem:[%s0 + $0x20] sm:$0xff]
    %v19 = vld [vmem:[%s0 + $0x28] sm:$0xff]
    %v20 = vld [vmem:[%s0 + $0x30] sm:$0xff]
    %v21 = vld [vmem:[%s0 + $0x38] sm:$0xff]
    %v22 = vld [vmem:[%s0 + $0x40] sm:$0x1]
    %v23 = vld [vmem:[%s0 + $0x41] sm:$0x1]
    %v24 = vld [vmem:[%s0 + $0x42] sm:$0x1]
    %v25 = vld [vmem:[%s0 + $0x43] sm:$0x1]
    %v26 = vld [vmem:[%s0 + $0x44] sm:$0x1]
    %v27 = vld [vmem:[%s0 + $0x48] sm:$0x3]
    %vm28 = vcmask 31744
    %v30 = vsel %vm28, %v12, 0
    %v33 = vsel %vm28, %v13, 0
    %vm35 = vcmask 1043456
    %v37 = vsel %vm35, %v16, 0
    %39 = vmatprep.subr.mxu0 0.0
    %40 = vmatpush1.msra.mxu0 0.0
    %41 = vmatprep.subr.mxu0 0.0
    %42 = vmatpush1.msra.mxu0 0.0
    %43 = vmatprep.subr.mxu0 0.0
    %44 = vmatpush1.msra.mxu0 0.0
    %45 = vmatprep.subr.mxu0 0.0
    %46 = vmatpush1.msra.mxu0 0.0
    %47 = vmatprep.subr.mxu0 0.0
    %48 = vmatpush1.msra.mxu0 0.0
    %49 = vmatprep.subr.mxu0 0.0
    %50 = vmatpush1.msra.mxu0 0.0
    %51 = vmatprep.subr.mxu0 0.0
    %52 = vmatpush1.msra.mxu0 0.0
    %53 = vmatprep.subr.mxu0 0.0
    %54 = vmatpush1.msra.mxu0 0.0
    %55 = vmatprep.subr.mxu0 0.0
    %56 = vmatpush1.msra.mxu0 0.0
    %57 = vmatprep.subr.mxu0 0.0
    %58 = vmatpush1.msra.mxu0 0.0
    %59 = vmatprep.subr.mxu0 0.0
    %60 = vmatpush1.msra.mxu0 0.0
    %61 = vmatprep.subr.mxu0 0.0
    %62 = vmatpush1.msra.mxu0 0.0
    %63 = vmatprep.subr.mxu0 0.0
    %64 = vmatpush1.msra.mxu0 0.0
    %65 = vmatprep.subr.mxu0 0.0
    %66 = vmatpush1.msra.mxu0 0.0
    %67 = vmatprep.subr.mxu0 0.0
    %68 = vmatpush1.msra.mxu0 0.0
    %69 = vmatprep.subr.mxu0 0.0
    %70 = vmatpush1.msra.mxu0 %v37
    %71 = vmatprep.subr.mxu0 0.0
    %72 = vmatpush2.msra.mxu0 0.0
    %73 = vmatprep.subr.mxu0 0.0
    %74 = vmatpush2.msra.mxu0 0.0
    %75 = vmatprep.subr.mxu0 0.0
    %76 = vmatpush2.msra.mxu0 0.0
    %77 = vmatprep.subr.mxu0 0.0
    %78 = vmatpush2.msra.mxu0 0.0
    %79 = vmatprep.subr.mxu0 0.0
    %80 = vmatpush2.msra.mxu0 0.0
    %81 = vmatprep.subr.mxu0 0.0
    %82 = vmatpush2.msra.mxu0 0.0
    %83 = vmatprep.subr.mxu0 0.0
    %84 = vmatpush2.msra.mxu0 0.0
    %85 = vmatprep.subr.mxu0 0.0
    %86 = vmatpush2.msra.mxu0 0.0
    %87 = vmatprep.subr.mxu0 0.0
    %88 = vmatpush2.msra.mxu0 0.0
    %89 = vmatprep.subr.mxu0 0.0
    %90 = vmatpush2.msra.mxu0 0.0
    %91 = vmatprep.subr.mxu0 0.0
    %92 = vmatpush2.msra.mxu0 0.0
    %93 = vmatprep.subr.mxu0 0.0
    %94 = vmatpush2.msra.mxu0 0.0
    %95 = vmatprep.subr.mxu0 0.0
    %96 = vmatpush2.msra.mxu0 0.0
    %97 = vmatprep.subr.mxu0 0.0
    %98 = vmatpush2.msra.mxu0 0.0
    %99 = vmatprep.subr.mxu0 0.0
    %100 = vmatpush2.msra.mxu0 0.0
    %101 = vmatprep.subr.mxu0 0.0
    %102 = vmatpush2.msra.mxu0 0.0
    %103 = vmatprep.mubr.f32.mxu0 0.0
    %104 = vmatmul.mubr.f32.gmra.mxu0 %v30
    %v105 = vpop.f32.mrf.mxu0
    %v106 = vadd.f32 0.0, %v105
    %v107 = vpop.f32.mrf.mxu0
    %108 = vmatprep.mubr.f32.mxu0 0.0
    %109 = vmatmul.mubr.f32.gmra.mxu0 %v33
    %v110 = vpop.f32.mrf.mxu0
    %v111 = vadd.f32 0.0, %v110
    %v112 = vpop.f32.mrf.mxu0
    %113 = vdwg.mxu0
    %v114 = vlaneseq
    %v115 = vshrl.u32 %v114, 7
    %v116 = vsub.s32 0, %v115
    %v117 = vrot.slane %v23, %v116
    %vm118 = vcmask 97280
    %v120 = vsel %vm118, %v14, 0
    %v123 = vsel %vm118, %v15, 0
    %v126 = vsel %vm35, %v111, 0
    %128 = vmatprep.subr.mxu0 0.0
    %129 = vmatpush1.msra.mxu0 0.0
    %130 = vmatprep.subr.mxu0 0.0
    %131 = vmatpush1.msra.mxu0 0.0
    %132 = vmatprep.subr.mxu0 0.0
    %133 = vmatpush1.msra.mxu0 0.0
    %134 = vmatprep.subr.mxu0 0.0
    %135 = vmatpush1.msra.mxu0 0.0
    %136 = vmatprep.subr.mxu0 0.0
    %137 = vmatpush1.msra.mxu0 0.0
    %138 = vmatprep.subr.mxu0 0.0
    %139 = vmatpush1.msra.mxu0 0.0
    %140 = vmatprep.subr.mxu0 0.0
    %141 = vmatpush1.msra.mxu0 0.0
    %142 = vmatprep.subr.mxu0 0.0
    %143 = vmatpush1.msra.mxu0 0.0
    %144 = vmatprep.subr.mxu0 0.0
    %145 = vmatpush1.msra.mxu0 0.0
    %146 = vmatprep.subr.mxu0 0.0
    %147 = vmatpush1.msra.mxu0 0.0
    %148 = vmatprep.subr.mxu0 0.0
    %149 = vmatpush1.msra.mxu0 0.0
    %150 = vmatprep.subr.mxu0 0.0
    %151 = vmatpush1.msra.mxu0 0.0
    %152 = vmatprep.subr.mxu0 0.0
    %153 = vmatpush1.msra.mxu0 0.0
    %154 = vmatprep.subr.mxu0 0.0
    %155 = vmatpush1.msra.mxu0 0.0
    %156 = vmatprep.subr.mxu0 0.0
    %157 = vmatpush1.msra.mxu0 %v126
    %158 = vmatprep.subr.mxu0 0.0
    %159 = vmatpush1.msra.mxu0 %v106
    %160 = vmatprep.subr.mxu0 0.0
    %161 = vmatpush2.msra.mxu0 0.0
    %162 = vmatprep.subr.mxu0 0.0
    %163 = vmatpush2.msra.mxu0 0.0
    %164 = vmatprep.subr.mxu0 0.0
    %165 = vmatpush2.msra.mxu0 0.0
    %166 = vmatprep.subr.mxu0 0.0
    %167 = vmatpush2.msra.mxu0 0.0
    %168 = vmatprep.subr.mxu0 0.0
    %169 = vmatpush2.msra.mxu0 0.0
    %170 = vmatprep.subr.mxu0 0.0
    %171 = vmatpush2.msra.mxu0 0.0
    %172 = vmatprep.subr.mxu0 0.0
    %173 = vmatpush2.msra.mxu0 0.0
    %174 = vmatprep.subr.mxu0 0.0
    %175 = vmatpush2.msra.mxu0 0.0
    %176 = vmatprep.subr.mxu0 0.0
    %177 = vmatpush2.msra.mxu0 0.0
    %178 = vmatprep.subr.mxu0 0.0
    %179 = vmatpush2.msra.mxu0 0.0
    %180 = vmatprep.subr.mxu0 0.0
    %181 = vmatpush2.msra.mxu0 0.0
    %182 = vmatprep.subr.mxu0 0.0
    %183 = vmatpush2.msra.mxu0 0.0
    %184 = vmatprep.subr.mxu0 0.0
    %185 = vmatpush2.msra.mxu0 0.0
    %186 = vmatprep.subr.mxu0 0.0
    %187 = vmatpush2.msra.mxu0 0.0
    %188 = vmatprep.subr.mxu0 0.0
    %189 = vmatpush2.msra.mxu0 0.0
    %190 = vmatprep.subr.mxu0 0.0
    %191 = vmatpush2.msra.mxu0 0.0
    %192 = vmatprep.mubr.f32.mxu0 0.0
    %193 = vmatmul.mubr.f32.gmra.mxu0 %v120
    %v194 = vpop.f32.mrf.mxu0
    %v195 = vadd.f32 %v117, %v194
    %v196 = vpop.f32.mrf.mxu0
    %197 = vmatprep.mubr.f32.mxu0 0.0
    %198 = vmatmul.mubr.f32.gmra.mxu0 %v123
    %v199 = vpop.f32.mrf.mxu0
    %v200 = vadd.f32 %v117, %v199
    %v201 = vpop.f32.mrf.mxu0
    %202 = vdwg.mxu0
    %v203 = vmax.f32 %v195, 0.0
    %v204 = vmax.f32 %v200, 0.0
    %v206 = vsel %vm28, %v203, 0
    %v209 = vsel %vm28, %v204, 0
    %v212 = vsel %vm35, %v17, 0
    %214 = vmatprep.subr.mxu0 0.0
    %215 = vmatpush1.msra.mxu0 0.0
    %216 = vmatprep.subr.mxu0 0.0
    %217 = vmatpush1.msra.mxu0 0.0
    %218 = vmatprep.subr.mxu0 0.0
    %219 = vmatpush1.msra.mxu0 0.0
    %220 = vmatprep.subr.mxu0 0.0
    %221 = vmatpush1.msra.mxu0 0.0
    %222 = vmatprep.subr.mxu0 0.0
    %223 = vmatpush1.msra.mxu0 0.0
    %224 = vmatprep.subr.mxu0 0.0
    %225 = vmatpush1.msra.mxu0 0.0
    %226 = vmatprep.subr.mxu0 0.0
    %227 = vmatpush1.msra.mxu0 0.0
    %228 = vmatprep.subr.mxu0 0.0
    %229 = vmatpush1.msra.mxu0 0.0
    %230 = vmatprep.subr.mxu0 0.0
    %231 = vmatpush1.msra.mxu0 0.0
    %232 = vmatprep.subr.mxu0 0.0
    %233 = vmatpush1.msra.mxu0 0.0
    %234 = vmatprep.subr.mxu0 0.0
    %235 = vmatpush1.msra.mxu0 0.0
    %236 = vmatprep.subr.mxu0 0.0
    %237 = vmatpush1.msra.mxu0 0.0
    %238 = vmatprep.subr.mxu0 0.0
    %239 = vmatpush1.msra.mxu0 0.0
    %240 = vmatprep.subr.mxu0 0.0
    %241 = vmatpush1.msra.mxu0 0.0
    %242 = vmatprep.subr.mxu0 0.0
    %243 = vmatpush1.msra.mxu0 0.0
    %244 = vmatprep.subr.mxu0 0.0
    %245 = vmatpush1.msra.mxu0 %v212
    %246 = vmatprep.subr.mxu0 0.0
    %247 = vmatpush2.msra.mxu0 0.0
    %248 = vmatprep.subr.mxu0 0.0
    %249 = vmatpush2.msra.mxu0 0.0
    %250 = vmatprep.subr.mxu0 0.0
    %251 = vmatpush2.msra.mxu0 0.0
    %252 = vmatprep.subr.mxu0 0.0
    %253 = vmatpush2.msra.mxu0 0.0
    %254 = vmatprep.subr.mxu0 0.0
    %255 = vmatpush2.msra.mxu0 0.0
    %256 = vmatprep.subr.mxu0 0.0
    %257 = vmatpush2.msra.mxu0 0.0
    %258 = vmatprep.subr.mxu0 0.0
    %259 = vmatpush2.msra.mxu0 0.0
    %260 = vmatprep.subr.mxu0 0.0
    %261 = vmatpush2.msra.mxu0 0.0
    %262 = vmatprep.subr.mxu0 0.0
    %263 = vmatpush2.msra.mxu0 0.0
    %264 = vmatprep.subr.mxu0 0.0
    %265 = vmatpush2.msra.mxu0 0.0
    %266 = vmatprep.subr.mxu0 0.0
    %267 = vmatpush2.msra.mxu0 0.0
    %268 = vmatprep.subr.mxu0 0.0
    %269 = vmatpush2.msra.mxu0 0.0
    %270 = vmatprep.subr.mxu0 0.0
    %271 = vmatpush2.msra.mxu0 0.0
    %272 = vmatprep.subr.mxu0 0.0
    %273 = vmatpush2.msra.mxu0 0.0
    %274 = vmatprep.subr.mxu0 0.0
    %275 = vmatpush2.msra.mxu0 0.0
    %276 = vmatprep.subr.mxu0 0.0
    %277 = vmatpush2.msra.mxu0 0.0
    %278 = vmatprep.mubr.f32.mxu0 0.0
    %279 = vmatmul.mubr.f32.gmra.mxu0 %v206
    %v280 = vpop.f32.mrf.mxu0
    %v281 = vadd.f32 0.0, %v280
    %v282 = vpop.f32.mrf.mxu0
    %283 = vmatprep.mubr.f32.mxu0 0.0
    %284 = vmatmul.mubr.f32.gmra.mxu0 %v209
    %v285 = vpop.f32.mrf.mxu0
    %v286 = vadd.f32 0.0, %v285
    %v287 = vpop.f32.mrf.mxu0
    %288 = vdwg.mxu0
    %vm289 = vcmask 48128
    %v290 = vsel %vm289, %v12, 0
    %v292 = vsel %vm289, %v13, 0
    %vm294 = vcmask 1045504
    %v295 = vsel %vm294, %v17, 0
    %297 = vmatprep.subr.mxu0 0.0
    %298 = vmatpush1.msra.mxu0 0.0
    %299 = vmatprep.subr.mxu0 0.0
    %300 = vmatpush1.msra.mxu0 0.0
    %301 = vmatprep.subr.mxu0 0.0
    %302 = vmatpush1.msra.mxu0 0.0
    %303 = vmatprep.subr.mxu0 0.0
    %304 = vmatpush1.msra.mxu0 0.0
    %305 = vmatprep.subr.mxu0 0.0
    %306 = vmatpush1.msra.mxu0 0.0
    %307 = vmatprep.subr.mxu0 0.0
    %308 = vmatpush1.msra.mxu0 0.0
    %309 = vmatprep.subr.mxu0 0.0
    %310 = vmatpush1.msra.mxu0 0.0
    %311 = vmatprep.subr.mxu0 0.0
    %312 = vmatpush1.msra.mxu0 0.0
    %313 = vmatprep.subr.mxu0 0.0
    %314 = vmatpush1.msra.mxu0 0.0
    %315 = vmatprep.subr.mxu0 0.0
    %316 = vmatpush1.msra.mxu0 0.0
    %317 = vmatprep.subr.mxu0 0.0
    %318 = vmatpush1.msra.mxu0 0.0
    %319 = vmatprep.subr.mxu0 0.0
    %320 = vmatpush1.msra.mxu0 0.0
    %321 = vmatprep.subr.mxu0 0.0
    %322 = vmatpush1.msra.mxu0 0.0
    %323 = vmatprep.subr.mxu0 0.0
    %324 = vmatpush1.msra.mxu0 0.0
    %325 = vmatprep.subr.mxu0 0.0
    %326 = vmatpush1.msra.mxu0 0.0
    %327 = vmatprep.subr.mxu0 0.0
    %328 = vmatpush1.msra.mxu0 %v295
    %329 = vmatprep.subr.mxu0 0.0
    %330 = vmatpush2.msra.mxu0 0.0
    %331 = vmatprep.subr.mxu0 0.0
    %332 = vmatpush2.msra.mxu0 0.0
    %333 = vmatprep.subr.mxu0 0.0
    %334 = vmatpush2.msra.mxu0 0.0
    %335 = vmatprep.subr.mxu0 0.0
    %336 = vmatpush2.msra.mxu0 0.0
    %337 = vmatprep.subr.mxu0 0.0
    %338 = vmatpush2.msra.mxu0 0.0
    %339 = vmatprep.subr.mxu0 0.0
    %340 = vmatpush2.msra.mxu0 0.0
    %341 = vmatprep.subr.mxu0 0.0
    %342 = vmatpush2.msra.mxu0 0.0
    %343 = vmatprep.subr.mxu0 0.0
    %344 = vmatpush2.msra.mxu0 0.0
    %345 = vmatprep.subr.mxu0 0.0
    %346 = vmatpush2.msra.mxu0 0.0
    %347 = vmatprep.subr.mxu0 0.0
    %348 = vmatpush2.msra.mxu0 0.0
    %349 = vmatprep.subr.mxu0 0.0
    %350 = vmatpush2.msra.mxu0 0.0
    %351 = vmatprep.subr.mxu0 0.0
    %352 = vmatpush2.msra.mxu0 0.0
    %353 = vmatprep.subr.mxu0 0.0
    %354 = vmatpush2.msra.mxu0 0.0
    %355 = vmatprep.subr.mxu0 0.0
    %356 = vmatpush2.msra.mxu0 0.0
    %357 = vmatprep.subr.mxu0 0.0
    %358 = vmatpush2.msra.mxu0 0.0
    %359 = vmatprep.subr.mxu0 0.0
    %360 = vmatpush2.msra.mxu0 0.0
    %361 = vmatprep.mubr.f32.mxu0 0.0
    %362 = vmatmul.mubr.f32.gmra.mxu0 %v290
    %v363 = vpop.f32.mrf.mxu0
    %v364 = vadd.f32 %v281, %v363
    %v365 = vpop.f32.mrf.mxu0
    %366 = vmatprep.mubr.f32.mxu0 0.0
    %367 = vmatmul.mubr.f32.gmra.mxu0 %v292
    %v368 = vpop.f32.mrf.mxu0
    %v369 = vadd.f32 %v286, %v368
    %v370 = vpop.f32.mrf.mxu0
    %371 = vdwg.mxu0
    %v372 = vlaneseq
    %v373 = vshrl.u32 %v372, 7
    %v374 = vsub.s32 0, %v373
    %v375 = vrot.slane %v24, %v374
    %v376 = vadd.f32 %v364, %v375
    %v377 = vadd.f32 %v369, %v375
    %v378 = vmax.f32 %v376, 0.0
    %v379 = vmax.f32 %v377, 0.0
    %v380 = vlaneseq
    %v381 = vshrl.u32 %v380, 7
    %v382 = vsub.s32 0, %v381
    %v383 = vrot.slane %v25, %v382
    %vm384 = vcmask 261120
    %v386 = vsel %vm384, %v378, 0
    %v389 = vsel %vm384, %v379, 0
    %391 = vmatprep.subr.mxu0 0.0
    %392 = vmatpush1.msra.mxu0 0.0
    %393 = vmatprep.subr.mxu0 0.0
    %394 = vmatpush1.msra.mxu0 0.0
    %395 = vmatprep.subr.mxu0 0.0
    %396 = vmatpush1.msra.mxu0 0.0
    %397 = vmatprep.subr.mxu0 0.0
    %398 = vmatpush1.msra.mxu0 0.0
    %399 = vmatprep.subr.mxu0 0.0
    %400 = vmatpush1.msra.mxu0 0.0
    %401 = vmatprep.subr.mxu0 0.0
    %402 = vmatpush1.msra.mxu0 0.0
    %403 = vmatprep.subr.mxu0 0.0
    %404 = vmatpush1.msra.mxu0 0.0
    %405 = vmatprep.subr.mxu0 0.0
    %406 = vmatpush1.msra.mxu0 0.0
    %407 = vmatprep.subr.mxu0 0.0
    %408 = vmatpush1.msra.mxu0 0.0
    %409 = vmatprep.subr.mxu0 0.0
    %410 = vmatpush1.msra.mxu0 0.0
    %411 = vmatprep.subr.mxu0 0.0
    %412 = vmatpush1.msra.mxu0 0.0
    %413 = vmatprep.subr.mxu0 0.0
    %414 = vmatpush1.msra.mxu0 0.0
    %415 = vmatprep.subr.mxu0 0.0
    %416 = vmatpush1.msra.mxu0 %v21
    %417 = vmatprep.subr.mxu0 0.0
    %418 = vmatpush1.msra.mxu0 %v20
    %419 = vmatprep.subr.mxu0 0.0
    %420 = vmatpush1.msra.mxu0 %v19
    %421 = vmatprep.subr.mxu0 0.0
    %422 = vmatpush1.msra.mxu0 %v18
    %423 = vmatprep.subr.mxu0 0.0
    %424 = vmatpush2.msra.mxu0 0.0
    %425 = vmatprep.subr.mxu0 0.0
    %426 = vmatpush2.msra.mxu0 0.0
    %427 = vmatprep.subr.mxu0 0.0
    %428 = vmatpush2.msra.mxu0 0.0
    %429 = vmatprep.subr.mxu0 0.0
    %430 = vmatpush2.msra.mxu0 0.0
    %431 = vmatprep.subr.mxu0 0.0
    %432 = vmatpush2.msra.mxu0 0.0
    %433 = vmatprep.subr.mxu0 0.0
    %434 = vmatpush2.msra.mxu0 0.0
    %435 = vmatprep.subr.mxu0 0.0
    %436 = vmatpush2.msra.mxu0 0.0
    %437 = vmatprep.subr.mxu0 0.0
    %438 = vmatpush2.msra.mxu0 0.0
    %439 = vmatprep.subr.mxu0 0.0
    %440 = vmatpush2.msra.mxu0 0.0
    %441 = vmatprep.subr.mxu0 0.0
    %442 = vmatpush2.msra.mxu0 0.0
    %443 = vmatprep.subr.mxu0 0.0
    %444 = vmatpush2.msra.mxu0 0.0
    %445 = vmatprep.subr.mxu0 0.0
    %446 = vmatpush2.msra.mxu0 0.0
    %447 = vmatprep.subr.mxu0 0.0
    %448 = vmatpush2.msra.mxu0 0.0
    %449 = vmatprep.subr.mxu0 0.0
    %450 = vmatpush2.msra.mxu0 0.0
    %451 = vmatprep.subr.mxu0 0.0
    %452 = vmatpush2.msra.mxu0 0.0
    %453 = vmatprep.subr.mxu0 0.0
    %454 = vmatpush2.msra.mxu0 0.0
    %455 = vmatprep.mubr.f32.mxu0 0.0
    %456 = vmatmul.mubr.f32.gmra.mxu0 %v386
    %v457 = vpop.f32.mrf.mxu0
    %v458 = vadd.f32 %v383, %v457
    %v459 = vpop.f32.mrf.mxu0
    %460 = vmatprep.mubr.f32.mxu0 0.0
    %461 = vmatmul.mubr.f32.gmra.mxu0 %v389
    %v462 = vpop.f32.mrf.mxu0
    %v463 = vadd.f32 %v383, %v462
    %v464 = vpop.f32.mrf.mxu0
    %465 = vdwg.mxu0
    %v466 = vmax.f32 %v458, 0.0
    %v467 = vmax.f32 %v463, 0.0
    %v469 = vsel %vm118, %v27, 0
    %v472 = vsel %vm35, %v467, 0
    %474 = vmatprep.subr.mxu0 0.0
    %475 = vmatpush1.msra.mxu0 0.0
    %476 = vmatprep.subr.mxu0 0.0
    %477 = vmatpush1.msra.mxu0 0.0
    %478 = vmatprep.subr.mxu0 0.0
    %479 = vmatpush1.msra.mxu0 0.0
    %480 = vmatprep.subr.mxu0 0.0
    %481 = vmatpush1.msra.mxu0 0.0
    %482 = vmatprep.subr.mxu0 0.0
    %483 = vmatpush1.msra.mxu0 0.0
    %484 = vmatprep.subr.mxu0 0.0
    %485 = vmatpush1.msra.mxu0 0.0
    %486 = vmatprep.subr.mxu0 0.0
    %487 = vmatpush1.msra.mxu0 0.0
    %488 = vmatprep.subr.mxu0 0.0
    %489 = vmatpush1.msra.mxu0 0.0
    %490 = vmatprep.subr.mxu0 0.0
    %491 = vmatpush1.msra.mxu0 0.0
    %492 = vmatprep.subr.mxu0 0.0
    %493 = vmatpush1.msra.mxu0 0.0
    %494 = vmatprep.subr.mxu0 0.0
    %495 = vmatpush1.msra.mxu0 0.0
    %496 = vmatprep.subr.mxu0 0.0
    %497 = vmatpush1.msra.mxu0 0.0
    %498 = vmatprep.subr.mxu0 0.0
    %499 = vmatpush1.msra.mxu0 0.0
    %500 = vmatprep.subr.mxu0 0.0
    %501 = vmatpush1.msra.mxu0 0.0
    %502 = vmatprep.subr.mxu0 0.0
    %503 = vmatpush1.msra.mxu0 %v472
    %504 = vmatprep.subr.mxu0 0.0
    %505 = vmatpush1.msra.mxu0 %v466
    %506 = vmatprep.subr.mxu0 0.0
    %507 = vmatpush2.msra.mxu0 0.0
    %508 = vmatprep.subr.mxu0 0.0
    %509 = vmatpush2.msra.mxu0 0.0
    %510 = vmatprep.subr.mxu0 0.0
    %511 = vmatpush2.msra.mxu0 0.0
    %512 = vmatprep.subr.mxu0 0.0
    %513 = vmatpush2.msra.mxu0 0.0
    %514 = vmatprep.subr.mxu0 0.0
    %515 = vmatpush2.msra.mxu0 0.0
    %516 = vmatprep.subr.mxu0 0.0
    %517 = vmatpush2.msra.mxu0 0.0
    %518 = vmatprep.subr.mxu0 0.0
    %519 = vmatpush2.msra.mxu0 0.0
    %520 = vmatprep.subr.mxu0 0.0
    %521 = vmatpush2.msra.mxu0 0.0
    %522 = vmatprep.subr.mxu0 0.0
    %523 = vmatpush2.msra.mxu0 0.0
    %524 = vmatprep.subr.mxu0 0.0
    %525 = vmatpush2.msra.mxu0 0.0
    %526 = vmatprep.subr.mxu0 0.0
    %527 = vmatpush2.msra.mxu0 0.0
    %528 = vmatprep.subr.mxu0 0.0
    %529 = vmatpush2.msra.mxu0 0.0
    %530 = vmatprep.subr.mxu0 0.0
    %531 = vmatpush2.msra.mxu0 0.0
    %532 = vmatprep.subr.mxu0 0.0
    %533 = vmatpush2.msra.mxu0 0.0
    %534 = vmatprep.subr.mxu0 0.0
    %535 = vmatpush2.msra.mxu0 0.0
    %536 = vmatprep.subr.mxu0 0.0
    %537 = vmatpush2.msra.mxu0 0.0
    %538 = vmatprep.mubr.f32.mxu0 0.0
    %539 = vmatmul.mubr.f32.gmra.mxu0 %v469
    %v540 = vpop.f32.mrf.mxu0
    %v541 = vadd.f32 0.0, %v540
    %v542 = vpop.f32.mrf.mxu0
    %543 = vdwg.mxu0
    %545 = vset.pattern.permute.xlu0 0
    %546 = vperm.xlu0 %545, %v26
    %v547 = vpop.permute.xlu0 %546
    %v550 = vsel %vm384, %v22, 0
    %v553 = vsel %vm384, %v541, 0
    %555 = vmatprep.subr.mxu0 0.0
    %556 = vmatpush1.xpose.msra.mxu0 0.0
    %557 = vmatprep.subr.mxu0 0.0
    %558 = vmatpush1.xpose.msra.mxu0 0.0
    %559 = vmatprep.subr.mxu0 0.0
    %560 = vmatpush1.xpose.msra.mxu0 0.0
    %561 = vmatprep.subr.mxu0 0.0
    %562 = vmatpush1.xpose.msra.mxu0 0.0
    %563 = vmatprep.subr.mxu0 0.0
    %564 = vmatpush1.xpose.msra.mxu0 0.0
    %565 = vmatprep.subr.mxu0 0.0
    %566 = vmatpush1.xpose.msra.mxu0 0.0
    %567 = vmatprep.subr.mxu0 0.0
    %568 = vmatpush1.xpose.msra.mxu0 0.0
    %569 = vmatprep.subr.mxu0 0.0
    %570 = vmatpush1.xpose.msra.mxu0 0.0
    %571 = vmatprep.subr.mxu0 0.0
    %572 = vmatpush1.xpose.msra.mxu0 0.0
    %573 = vmatprep.subr.mxu0 0.0
    %574 = vmatpush1.xpose.msra.mxu0 0.0
    %575 = vmatprep.subr.mxu0 0.0
    %576 = vmatpush1.xpose.msra.mxu0 0.0
    %577 = vmatprep.subr.mxu0 0.0
    %578 = vmatpush1.xpose.msra.mxu0 0.0
    %579 = vmatprep.subr.mxu0 0.0
    %580 = vmatpush1.xpose.msra.mxu0 0.0
    %581 = vmatprep.subr.mxu0 0.0
    %582 = vmatpush1.xpose.msra.mxu0 0.0
    %583 = vmatprep.subr.mxu0 0.0
    %584 = vmatpush1.xpose.msra.mxu0 0.0
    %585 = vmatprep.subr.mxu0 0.0
    %586 = vmatpush1.xpose.msra.mxu0 %v553
    %587 = vmatprep.subr.mxu0 0.0
    %588 = vmatpush2.xpose.msra.mxu0 0.0
    %589 = vmatprep.subr.mxu0 0.0
    %590 = vmatpush2.xpose.msra.mxu0 0.0
    %591 = vmatprep.subr.mxu0 0.0
    %592 = vmatpush2.xpose.msra.mxu0 0.0
    %593 = vmatprep.subr.mxu0 0.0
    %594 = vmatpush2.xpose.msra.mxu0 0.0
    %595 = vmatprep.subr.mxu0 0.0
    %596 = vmatpush2.xpose.msra.mxu0 0.0
    %597 = vmatprep.subr.mxu0 0.0
    %598 = vmatpush2.xpose.msra.mxu0 0.0
    %599 = vmatprep.subr.mxu0 0.0
    %600 = vmatpush2.xpose.msra.mxu0 0.0
    %601 = vmatprep.subr.mxu0 0.0
    %602 = vmatpush2.xpose.msra.mxu0 0.0
    %603 = vmatprep.subr.mxu0 0.0
    %604 = vmatpush2.xpose.msra.mxu0 0.0
    %605 = vmatprep.subr.mxu0 0.0
    %606 = vmatpush2.xpose.msra.mxu0 0.0
    %607 = vmatprep.subr.mxu0 0.0
    %608 = vmatpush2.xpose.msra.mxu0 0.0
    %609 = vmatprep.subr.mxu0 0.0
    %610 = vmatpush2.xpose.msra.mxu0 0.0
    %611 = vmatprep.subr.mxu0 0.0
    %612 = vmatpush2.xpose.msra.mxu0 0.0
    %613 = vmatprep.subr.mxu0 0.0
    %614 = vmatpush2.xpose.msra.mxu0 0.0
    %615 = vmatprep.subr.mxu0 0.0
    %616 = vmatpush2.xpose.msra.mxu0 0.0
    %617 = vmatprep.subr.mxu0 0.0
    %618 = vmatpush2.xpose.msra.mxu0 0.0
    %619 = vmatprep.mubr.f32.mxu0 0.0
    %620 = vmatmul.mubr.f32.gmra.mxu0 %v550
    %v621 = vpop.f32.mrf.mxu0
    %v622 = vadd.f32 %v547, %v621
    %v623 = vpop.f32.mrf.mxu0
    %624 = vdwg.mxu0
    %vm625 = vcmask 8192
    %626 = vst.msk [vmem:[#allocation2] sm:$0x1] %vm625, %v622
    // Predicated region
    $region10: #{gnn_critic_forward.1} parent=1 // pred_check
      _
    $region11: #{gnn_critic_forward.1} parent=1 // pred_check_branch
      %628 = sbr.rel (0) target = $region13
    $region12: #{gnn_critic_forward.1} parent=1 // pred_region
      %s630 = ssub.s32 16, 16
      %631 = vsyncadd [#allocation3], %s630
      %s633 = sshll.u32 [#allocation2], 4
      %s634 = int_to_ptr.vmem [resolvable:$true] %s633
      %636 = dma.vmem_to_hbm [thread:$0]  %s634, 16, %s2, [#allocation3]
    $region13: #{gnn_critic_forward.1} parent=1 // pred_fallthru
      _
    // Predicated region
    $region14: #{gnn_critic_forward.1} parent=1 // pred_check
      _
    $region15: #{gnn_critic_forward.1} parent=1 // pred_check_branch
      %638 = sbr.rel (0) target = $region17
    $region16: #{gnn_critic_forward.1} parent=1 // pred_region
      %639 = dma.done [#allocation3], 16
    $region17: #{gnn_critic_forward.1} parent=1 // pred_fallthru
      _
    %640 = vsyncpa [#allocation3], 1

</llo_original>
